<compile_context>
chip_gen: v5e
topology: v5e:2x2
jax: 0.10.0
libtpu: 0.0.40
codegen_flags: <defaults>
</compile_context>

<pallas_src>
import functools
import math

import jax
import jax.numpy as jnp
import numpy as np
from jax.experimental import pallas as pl
from jax.experimental.pallas import tpu as pltpu


# ------------------------------ math helpers -------------------------------

def _gelu_erf(x):
    """erf-based GELU (matches torch nn.GELU() default).

    erf is evaluated with the Abramowitz–Stegun 7.1.26 rational approximation
    (|err| < 1.5e-7) so the kernel epilogue only needs exp / mul / add / select,
    all of which lower cleanly on the VPU/EUP.
    """
    z = x * (1.0 / math.sqrt(2.0))
    a = jnp.abs(z)
    t = 1.0 / (1.0 + 0.3275911 * a)
    poly = t * (0.254829592
                + t * (-0.284496736
                       + t * (1.421413741
                              + t * (-1.453152027 + t * 1.061405429))))
    erf_abs = 1.0 - poly * jnp.exp(-a * a)
    erf = jnp.where(z >= 0.0, erf_abs, -erf_abs)
    return 0.5 * x * (1.0 + erf)


def _layer_norm(x, gamma, beta, eps):
    mean = jnp.mean(x, axis=-1, keepdims=True)
    xc = x - mean
    var = jnp.mean(xc * xc, axis=-1, keepdims=True)
    return xc * jax.lax.rsqrt(var + eps) * gamma + beta


def _nbytes(shape, dtype):
    return int(np.prod(shape)) * jnp.dtype(dtype).itemsize


# --------------------------------- kernel ----------------------------------

def _fnet_layer_kernel(ln1_eps, ln2_eps,
                       x_ref, csss_ref, chsh_ref, w1_ref, b1_ref, w2_ref,
                       vecs_ref, o_ref):
    tb, S, H = x_ref.shape                       # TB batch elements per grid step
    rows = tb * S
    ddt = chsh_ref.dtype                         # DFT-matrix MXU operand dtype
    wdt = w1_ref.dtype                           # FFN weight MXU operand dtype

    x = x_ref[...]                               # (TB, S, H) f32, kept for residual
    x2d = x.reshape(rows, H)                     # lane-layout-preserving (S % 8 == 0)

    # ---- Fourier mixing: Re(FFT2(x)) = Cs @ x @ Ch - Ss @ x @ Sh -------------
    # Hidden-dim side, fused: one M=rows, K=H, N=2H matmul -> [x@Ch | x@Sh].
    xchsh = jnp.dot(x2d.astype(ddt), chsh_ref[...],
                    preferred_element_type=jnp.float32)          # (rows, 2H) f32
    xch = xchsh[:, :H].reshape(tb, S, H)
    xsh = xchsh[:, H:].reshape(tb, S, H)
    # Seq-dim side, fused: [Cs | -Ss] @ [x@Ch ; x@Sh] as a single K=2S batched matmul.
    xstack = jnp.concatenate([xch, xsh], axis=1).astype(ddt)     # (TB, 2S, H)
    csss = jnp.broadcast_to(csss_ref[...][None], (tb, S, 2 * S)).astype(ddt)
    mix = jnp.einsum("bsk,bkh->bsh", csss, xstack,
                     preferred_element_type=jnp.float32)         # (TB, S, H) f32

    y = _layer_norm(x + mix, vecs_ref[0], vecs_ref[1], ln1_eps)  # (TB, S, H) f32
    y2d = y.reshape(rows, H)

    # ---- Feed-forward: Linear1 -> GELU(erf) -> Linear2 (+ eval-mode dropout) -
    h = jnp.dot(y2d.astype(wdt), w1_ref[...],
                preferred_element_type=jnp.float32)              # (rows, F) f32
    h = _gelu_erf(h + b1_ref[...])                               # f32 epilogue
    ff = jnp.dot(h.astype(wdt), w2_ref[...],
                 preferred_element_type=jnp.float32)             # (rows, H) f32
    ff = ff + vecs_ref[2]                                        # + b2
    # TODO(synk): dropout is an eval-mode no-op; a training mask would use
    # pltpu.prng_seed + pltpu.stateful_bernoulli.

    out2d = _layer_norm(y2d + ff, vecs_ref[3], vecs_ref[4], ln2_eps)
    o_ref[...] = out2d.reshape(tb, S, H).astype(o_ref.dtype)


# -------------------------------- wrapper -----------------------------------

def _choose_block_batch(batch, seq, target_rows=256):
    """Pick TB batch elements per grid step.

    TB*S aims for >= 256 rows (fills the 256-wide MXU on v6e/v7x, >=128 on v5e),
    while keeping at least 2 grid steps when B >= 2 so v7x megacore sharding has
    work for both TensorCores.  TB is chosen to divide B exactly.
    """
    max_tb = max(1, target_rows // max(seq, 1))
    if batch >= 2:
        max_tb = min(max_tb, (batch + 1) // 2)   # keep grid >= 2
    max_tb = min(max_tb, batch)
    tb = 1
    for d in range(1, max_tb + 1):
        if batch % d == 0:
            tb = d
    return tb


@functools.partial(jax.jit, static_argnames=("ln1_eps", "ln2_eps"))
def fnet_layer_forward(x, params, ln1_eps=1e-5, ln2_eps=1e-5):
    """Fused FNet layer: LN1(x + Re(FFT2(x))) -> LN2(y + FFN(y))."""
    B, S, H = x.shape
    F = params["w1_t"].shape[1]
    tb = _choose_block_batch(B, S)
    grid = (B // tb,)

    def const_spec(shape):
        return pl.BlockSpec(shape, lambda b, _nd=len(shape): (0,) * _nd)

    in_specs = [
        pl.BlockSpec((tb, S, H), lambda b: (b, 0, 0)),   # x (packed batch tile)
        const_spec(params["csss"].shape),                # [Cs | -Ss]   (S, 2S)
        const_spec(params["chsh"].shape),                # [Ch |  Sh]   (H, 2H)
        const_spec(params["w1_t"].shape),                # W1^T         (H, F)
        const_spec(params["b1"].shape),                  # b1           (1, F)
        const_spec(params["w2_t"].shape),                # W2^T         (F, H)
        const_spec(params["vecs_h"].shape),              # [ln1_g;ln1_b;b2;ln2_g;ln2_b] (5, H)
    ]
    out_specs = pl.BlockSpec((tb, S, H), lambda b: (b, 0, 0))

    operands = (x, params["csss"], params["chsh"], params["w1_t"],
                params["b1"], params["w2_t"], params["vecs_h"])

    # ---- exact VMEM accounting (capped below the physical per-core capacity) ----
    xblk_bytes = _nbytes((tb, S, H), x.dtype)
    const_bytes = sum(_nbytes(o.shape, o.dtype) for o in operands[1:])
    rows = tb * S
    inter_bytes = 4 * rows * (2 * H      # xchsh
                              + 2 * H    # xstack
                              + H        # mix
                              + 2 * H    # x + mix, y
                              + 2 * F    # h / GELU temporaries
                              + 2 * H)   # ff / out
    needed = (2 * (2 * xblk_bytes)       # double-buffered x-in + out blocks
              + 2 * const_bytes          # worst case: invariants double-buffered too
              + inter_bytes)
    try:
        vmem_cap = int(pltpu.get_tpu_info().vmem_capacity_bytes)
    except Exception:
        vmem_cap = 64 * 2**20            # v7x per-core floor
    vmem_limit = int(min(int(0.75 * vmem_cap), max(16 * 2**20, 2 * needed)))

    cost = pl.CostEstimate(
        flops=int(B * (4 * S * H * H + 4 * S * S * H + 4 * S * H * F)),
        transcendentals=int(B * S * (F + 2)),
        bytes_accessed=int(2 * _nbytes((B, S, H), x.dtype) + const_bytes),
    )

    return pl.pallas_call(
        functools.partial(_fnet_layer_kernel, float(ln1_eps), float(ln2_eps)),
        out_shape=jax.ShapeDtypeStruct((B, S, H), x.dtype),
        grid_spec=pltpu.PrefetchScalarGridSpec(
            num_scalar_prefetch=0,
            grid=grid,
            in_specs=in_specs,
            out_specs=out_specs,
        ),
        compiler_params=pltpu.CompilerParams(
            dimension_semantics=("parallel",),
            vmem_limit_bytes=vmem_limit,
        ),
        cost_estimate=cost,
    )(*operands)


# ----------------------------- parameter setup ------------------------------

def _torch_linear_init(key, out_dim, in_dim):
    """Deterministic init matching nn.Linear's default (Kaiming-uniform-ish)."""
    kw, kb = jax.random.split(key)
    bound = 1.0 / math.sqrt(in_dim)
    w = jax.random.uniform(kw, (out_dim, in_dim), jnp.float32, -bound, bound)
    b = jax.random.uniform(kb, (out_dim,), jnp.float32, -bound, bound)
    return w, b


def init_raw_params(key, hidden, ff_dim):
    k1, k2, k3, k4, k5, k6 = jax.random.split(key, 6)
    w1, b1 = _torch_linear_init(k1, ff_dim, hidden)      # nn.Linear(H -> F)
    w2, b2 = _torch_linear_init(k2, hidden, ff_dim)      # nn.Linear(F -> H)
    return dict(
        w1=w1, b1=b1, w2=w2, b2=b2,
        ln1_g=1.0 + 0.1 * jax.random.normal(k3, (hidden,), jnp.float32),
        ln1_b=0.1 * jax.random.normal(k4, (hidden,), jnp.float32),
        ln2_g=1.0 + 0.1 * jax.random.normal(k5, (hidden,), jnp.float32),
        ln2_b=0.1 * jax.random.normal(k6, (hidden,), jnp.float32),
    )


def _dft_matrices(n):
    k = np.arange(n)
    ang = 2.0 * np.pi * np.outer(k, k) / n
    return np.cos(ang).astype(np.float32), np.sin(ang).astype(np.float32)


def prepare_params(raw, seq, hidden, *, compute_dtype=jnp.bfloat16,
                   dft_dtype=jnp.float32):
    """One-time setup: fused DFT matrices + pre-transposed / pre-cast MXU operands.

    compute_dtype: FFN weight MXU operand dtype (bf16 on all TPU generations;
    fp8 would only make sense on v7x at production sizes).
    dft_dtype: cos/sin matrix dtype; f32 by default since bf16 quantization of
    the DFT matrices grows with sequence length.
    """
    cs, ss = _dft_matrices(seq)
    ch, sh = _dft_matrices(hidden)
    csss = jnp.asarray(np.concatenate([cs, -ss], axis=1), dft_dtype)  # (S, 2S)
    chsh = jnp.asarray(np.concatenate([ch, sh], axis=1), dft_dtype)   # (H, 2H)
    ff_dim = raw["w1"].shape[0]
    vecs = jnp.stack([raw["ln1_g"], raw["ln1_b"], raw["b2"],
                      raw["ln2_g"], raw["ln2_b"]], axis=0).astype(jnp.float32)
    return dict(
        csss=csss, chsh=chsh,
        w1_t=raw["w1"].T.astype(compute_dtype),     # (H, F), transposed once at setup
        b1=raw["b1"].reshape(1, ff_dim).astype(jnp.float32),
        w2_t=raw["w2"].T.astype(compute_dtype),     # (F, H)
        vecs_h=vecs,                                # (5, H): ln1_g, ln1_b, b2, ln2_g, ln2_b
    )


# --------------------------------- reference --------------------------------

def fnet_layer_reference(x, raw, ln1_eps=1e-5, ln2_eps=1e-5):
    # torch: fftn(dim=-1) then fftn(dim=-2), take .real  (== Re(fft2))
    mix = jnp.real(jnp.fft.fft2(x, axes=(-2, -1))).astype(jnp.float32)
    y = _layer_norm(x + mix, raw["ln1_g"], raw["ln1_b"], ln1_eps)
    h = jax.nn.gelu(y @ raw["w1"].T + raw["b1"], approximate=False)
    ff = h @ raw["w2"].T + raw["b2"]
    return _layer_norm(y + ff, raw["ln2_g"], raw["ln2_b"], ln2_eps)


if __name__ == "__main__":
    key = jax.random.PRNGKey(0)
    kx, kp = jax.random.split(key)

    # Small, lane-dense demo shapes (hidden / ff multiples of 128, seq multiple of 8).
    batch, seq, hidden, ff_dim = 4, 8, 128, 256
    x = jax.random.normal(kx, (batch, seq, hidden), jnp.float32)
    raw = init_raw_params(kp, hidden, ff_dim)
    ref = fnet_layer_reference(x, raw)

    # f32 MXU operands everywhere: tight structural check against the jnp.fft reference.
    p32 = prepare_params(raw, seq, hidden,
                         compute_dtype=jnp.float32, dft_dtype=jnp.float32)
    out32 = jax.block_until_ready(fnet_layer_forward(x, p32))
    assert out32.shape == (batch, seq, hidden)
    assert jnp.allclose(out32, ref, atol=2e-2, rtol=2e-2), \
        float(jnp.max(jnp.abs(out32 - ref)))

    # Production config: bf16 FFN weights, f32 DFT matrices, f32 accumulation/epilogue.
    pbf = prepare_params(raw, seq, hidden)
    outbf = jax.block_until_ready(fnet_layer_forward(x, pbf))
    assert outbf.shape == (batch, seq, hidden)
    assert jnp.allclose(outbf, ref, atol=5e-2, rtol=5e-2), \
        float(jnp.max(jnp.abs(outbf - ref)))

    print("KERNEL_OK")
</pallas_src>

<mosaic_0001>
module attributes {stable_mosaic.version = 11 : i64} {
  func.func @_fnet_layer_kernel(%arg0: i32, %arg1: memref<2x8x128xf32, #tpu.memory_space<vmem>>, %arg2: memref<8x16xf32, #tpu.memory_space<vmem>>, %arg3: memref<128x256xf32, #tpu.memory_space<vmem>>, %arg4: memref<128x256xf32, #tpu.memory_space<vmem>>, %arg5: memref<1x256xf32, #tpu.memory_space<vmem>>, %arg6: memref<256x128xf32, #tpu.memory_space<vmem>>, %arg7: memref<5x128xf32, #tpu.memory_space<vmem>>, %arg8: memref<2x8x128xf32, #tpu.memory_space<vmem>>) attributes {dimension_semantics = [#tpu.dimension_semantics<parallel>], iteration_bounds = array<i64: 2>, scalar_prefetch = 0 : i64, scratch_operands = 0 : i64, tpu.core_type = #tpu.core_type<tc>, window_params = [{transform_indices = @transform_0, window_bounds = array<i64: 2, 8, 128>}, {pipeline_mode = #tpu.pipeline_mode<synchronous>, transform_indices = @transform_1, window_bounds = array<i64: 8, 16>}, {pipeline_mode = #tpu.pipeline_mode<synchronous>, transform_indices = @transform_2, window_bounds = array<i64: 128, 256>}, {pipeline_mode = #tpu.pipeline_mode<synchronous>, transform_indices = @transform_3, window_bounds = array<i64: 128, 256>}, {pipeline_mode = #tpu.pipeline_mode<synchronous>, transform_indices = @transform_4, window_bounds = array<i64: 1, 256>}, {pipeline_mode = #tpu.pipeline_mode<synchronous>, transform_indices = @transform_5, window_bounds = array<i64: 256, 128>}, {pipeline_mode = #tpu.pipeline_mode<synchronous>, transform_indices = @transform_6, window_bounds = array<i64: 5, 128>}, {transform_indices = @transform_7, window_bounds = array<i64: 2, 8, 128>}]} {
    %c0 = arith.constant 0 : index
    %c0_0 = arith.constant 0 : index
    %c0_1 = arith.constant 0 : index
    %0 = vector.load %arg1[%c0, %c0_0, %c0_1] : memref<2x8x128xf32, #tpu.memory_space<vmem>>, vector<2x8x128xf32>
    %1 = vector.shape_cast %0 : vector<2x8x128xf32> to vector<16x128xf32>
    %c0_2 = arith.constant 0 : index
    %c0_3 = arith.constant 0 : index
    %2 = vector.load %arg3[%c0_2, %c0_3] : memref<128x256xf32, #tpu.memory_space<vmem>>, vector<128x256xf32>
    %cst = arith.constant dense<0.000000e+00> : vector<16x256xf32>
    %3 = tpu.matmul %1, %2, %cst {dimension_numbers = #tpu.dot_dimension_numbers<[1], [0], [0], [1], [0, 0, 1, 1], [], []>} : vector<16x128xf32>, vector<128x256xf32>, vector<16x256xf32> -> vector<16x256xf32>
    %4 = vector.extract_strided_slice %3 {offsets = [0, 0], sizes = [16, 128], strides = [1, 1]} : vector<16x256xf32> to vector<16x128xf32>
    %5 = vector.shape_cast %4 : vector<16x128xf32> to vector<2x8x128xf32>
    %6 = vector.extract_strided_slice %3 {offsets = [0, 128], sizes = [16, 128], strides = [1, 1]} : vector<16x256xf32> to vector<16x128xf32>
    %7 = vector.shape_cast %6 : vector<16x128xf32> to vector<2x8x128xf32>
    %8 = tpu.concatenate %5, %7 in 1 : vector<2x8x128xf32>, vector<2x8x128xf32> -> vector<2x16x128xf32>
    %c0_4 = arith.constant 0 : index
    %c0_5 = arith.constant 0 : index
    %9 = vector.load %arg2[%c0_4, %c0_5] : memref<8x16xf32, #tpu.memory_space<vmem>>, vector<8x16xf32>
    %10 = vector.shape_cast %9 : vector<8x16xf32> to vector<1x8x16xf32>
    %11 = vector.shape_cast %10 : vector<1x8x16xf32> to vector<1x8x16xf32>
    %12 = vector.broadcast %11 : vector<1x8x16xf32> to vector<2x8x16xf32>
    "tpu.trace_start"() <{level = 10 : i32, message = "bsk,bkh->bsh"}> : () -> ()
    %cst_6 = arith.constant dense<0.000000e+00> : vector<2x8x128xf32>
    %13 = tpu.matmul %12, %8, %cst_6 {dimension_numbers = #tpu.dot_dimension_numbers<[2], [1], [1], [2], [0, 0, 0, 1, 1, 2], [0], [0]>} : vector<2x8x16xf32>, vector<2x16x128xf32>, vector<2x8x128xf32> -> vector<2x8x128xf32>
    "tpu.trace_stop"() : () -> ()
    %14 = arith.addf %0, %13 : vector<2x8x128xf32>
    %c0_7 = arith.constant 0 : index
    %c0_8 = arith.constant 0 : index
    %15 = vector.load %arg7[%c0_7, %c0_8] : memref<5x128xf32, #tpu.memory_space<vmem>>, vector<1x128xf32>
    %16 = vector.shape_cast %15 : vector<1x128xf32> to vector<128xf32>
    %c1 = arith.constant 1 : index
    %c0_9 = arith.constant 0 : index
    %17 = vector.load %arg7[%c1, %c0_9] : memref<5x128xf32, #tpu.memory_space<vmem>>, vector<1x128xf32>
    %18 = vector.shape_cast %17 : vector<1x128xf32> to vector<128xf32>
    %cst_10 = arith.constant dense<0.000000e+00> : vector<2x8xf32>
    %19 = vector.multi_reduction <add>, %14, %cst_10 [2] : vector<2x8x128xf32> to vector<2x8xf32>
    %20 = vector.shape_cast %19 : vector<2x8xf32> to vector<2x8x1xf32>
    %cst_11 = arith.constant 1.280000e+02 : f32
    %21 = vector.broadcast %cst_11 : f32 to vector<2x8x1xf32>
    %22 = arith.divf %20, %21 : vector<2x8x1xf32>
    %23 = vector.broadcast %22 : vector<2x8x1xf32> to vector<2x8x128xf32>
    %24 = arith.subf %14, %23 : vector<2x8x128xf32>
    %25 = arith.mulf %24, %24 : vector<2x8x128xf32>
    %cst_12 = arith.constant dense<0.000000e+00> : vector<2x8xf32>
    %26 = vector.multi_reduction <add>, %25, %cst_12 [2] : vector<2x8x128xf32> to vector<2x8xf32>
    %27 = vector.shape_cast %26 : vector<2x8xf32> to vector<2x8x1xf32>
    %cst_13 = arith.constant 1.280000e+02 : f32
    %28 = vector.broadcast %cst_13 : f32 to vector<2x8x1xf32>
    %29 = arith.divf %27, %28 : vector<2x8x1xf32>
    %cst_14 = arith.constant 9.99999974E-6 : f32
    %30 = vector.broadcast %cst_14 : f32 to vector<2x8x1xf32>
    %31 = arith.addf %29, %30 : vector<2x8x1xf32>
    %32 = math.rsqrt %31 : vector<2x8x1xf32>
    %33 = vector.broadcast %32 : vector<2x8x1xf32> to vector<2x8x128xf32>
    %34 = arith.mulf %24, %33 : vector<2x8x128xf32>
    %35 = vector.shape_cast %16 : vector<128xf32> to vector<1x1x128xf32>
    %36 = vector.broadcast %35 : vector<1x1x128xf32> to vector<2x8x128xf32>
    %37 = arith.mulf %34, %36 : vector<2x8x128xf32>
    %38 = vector.shape_cast %18 : vector<128xf32> to vector<1x1x128xf32>
    %39 = vector.broadcast %38 : vector<1x1x128xf32> to vector<2x8x128xf32>
    %40 = arith.addf %37, %39 : vector<2x8x128xf32>
    %41 = vector.shape_cast %40 : vector<2x8x128xf32> to vector<16x128xf32>
    %c0_15 = arith.constant 0 : index
    %c0_16 = arith.constant 0 : index
    %42 = vector.load %arg4[%c0_15, %c0_16] : memref<128x256xf32, #tpu.memory_space<vmem>>, vector<128x256xf32>
    %cst_17 = arith.constant dense<0.000000e+00> : vector<16x256xf32>
    %43 = tpu.matmul %41, %42, %cst_17 {dimension_numbers = #tpu.dot_dimension_numbers<[1], [0], [0], [1], [0, 0, 1, 1], [], []>} : vector<16x128xf32>, vector<128x256xf32>, vector<16x256xf32> -> vector<16x256xf32>
    %c0_18 = arith.constant 0 : index
    %c0_19 = arith.constant 0 : index
    %44 = vector.load %arg5[%c0_18, %c0_19] : memref<1x256xf32, #tpu.memory_space<vmem>>, vector<1x256xf32>
    %45 = vector.broadcast %44 : vector<1x256xf32> to vector<16x256xf32>
    %46 = arith.addf %43, %45 : vector<16x256xf32>
    %cst_20 = arith.constant 0.707106769 : f32
    %47 = vector.broadcast %cst_20 : f32 to vector<16x256xf32>
    %48 = arith.mulf %46, %47 : vector<16x256xf32>
    %49 = math.absf %48 : vector<16x256xf32>
    %cst_21 = arith.constant 0.327591091 : f32
    %50 = vector.broadcast %cst_21 : f32 to vector<16x256xf32>
    %51 = arith.mulf %50, %49 : vector<16x256xf32>
    %cst_22 = arith.constant 1.000000e+00 : f32
    %52 = vector.broadcast %cst_22 : f32 to vector<16x256xf32>
    %53 = arith.addf %52, %51 : vector<16x256xf32>
    %cst_23 = arith.constant 1.000000e+00 : f32
    %54 = vector.broadcast %cst_23 : f32 to vector<16x256xf32>
    %55 = arith.divf %54, %53 : vector<16x256xf32>
    %cst_24 = arith.constant 1.06140542 : f32
    %56 = vector.broadcast %cst_24 : f32 to vector<16x256xf32>
    %57 = arith.mulf %55, %56 : vector<16x256xf32>
    %cst_25 = arith.constant -1.45315206 : f32
    %58 = vector.broadcast %cst_25 : f32 to vector<16x256xf32>
    %59 = arith.addf %58, %57 : vector<16x256xf32>
    %60 = arith.mulf %55, %59 : vector<16x256xf32>
    %cst_26 = arith.constant 1.42141378 : f32
    %61 = vector.broadcast %cst_26 : f32 to vector<16x256xf32>
    %62 = arith.addf %61, %60 : vector<16x256xf32>
    %63 = arith.mulf %55, %62 : vector<16x256xf32>
    %cst_27 = arith.constant -0.284496725 : f32
    %64 = vector.broadcast %cst_27 : f32 to vector<16x256xf32>
    %65 = arith.addf %64, %63 : vector<16x256xf32>
    %66 = arith.mulf %55, %65 : vector<16x256xf32>
    %cst_28 = arith.constant 0.254829586 : f32
    %67 = vector.broadcast %cst_28 : f32 to vector<16x256xf32>
    %68 = arith.addf %67, %66 : vector<16x256xf32>
    %69 = arith.mulf %55, %68 : vector<16x256xf32>
    %cst_29 = arith.constant 0.000000e+00 : f32
    %70 = vector.broadcast %cst_29 : f32 to vector<16x256xf32>
    %71 = arith.subf %70, %49 : vector<16x256xf32>
    %72 = arith.mulf %71, %49 : vector<16x256xf32>
    %73 = math.exp %72 : vector<16x256xf32>
    %74 = arith.mulf %69, %73 : vector<16x256xf32>
    %cst_30 = arith.constant 1.000000e+00 : f32
    %75 = vector.broadcast %cst_30 : f32 to vector<16x256xf32>
    %76 = arith.subf %75, %74 : vector<16x256xf32>
    %cst_31 = arith.constant 0.000000e+00 : f32
    %77 = vector.broadcast %cst_31 : f32 to vector<16x256xf32>
    %78 = arith.cmpf oge, %48, %77 : vector<16x256xf32>
    %cst_32 = arith.constant 0.000000e+00 : f32
    %79 = vector.broadcast %cst_32 : f32 to vector<16x256xf32>
    %80 = arith.subf %79, %76 : vector<16x256xf32>
    %81 = arith.select %78, %76, %80 : vector<16x256xi1>, vector<16x256xf32>
    %cst_33 = arith.constant 5.000000e-01 : f32
    %82 = vector.broadcast %cst_33 : f32 to vector<16x256xf32>
    %83 = arith.mulf %82, %46 : vector<16x256xf32>
    %cst_34 = arith.constant 1.000000e+00 : f32
    %84 = vector.broadcast %cst_34 : f32 to vector<16x256xf32>
    %85 = arith.addf %84, %81 : vector<16x256xf32>
    %86 = arith.mulf %83, %85 : vector<16x256xf32>
    %c0_35 = arith.constant 0 : index
    %c0_36 = arith.constant 0 : index
    %87 = vector.load %arg6[%c0_35, %c0_36] : memref<256x128xf32, #tpu.memory_space<vmem>>, vector<256x128xf32>
    %cst_37 = arith.constant dense<0.000000e+00> : vector<16x128xf32>
    %88 = tpu.matmul %86, %87, %cst_37 {dimension_numbers = #tpu.dot_dimension_numbers<[1], [0], [0], [1], [0, 0, 1, 1], [], []>} : vector<16x256xf32>, vector<256x128xf32>, vector<16x128xf32> -> vector<16x128xf32>
    %c2 = arith.constant 2 : index
    %c0_38 = arith.constant 0 : index
    %89 = vector.load %arg7[%c2, %c0_38] : memref<5x128xf32, #tpu.memory_space<vmem>>, vector<1x128xf32>
    %90 = vector.shape_cast %89 : vector<1x128xf32> to vector<128xf32>
    %91 = vector.shape_cast %90 : vector<128xf32> to vector<1x128xf32>
    %92 = vector.broadcast %91 : vector<1x128xf32> to vector<16x128xf32>
    %93 = arith.addf %88, %92 : vector<16x128xf32>
    %94 = arith.addf %41, %93 : vector<16x128xf32>
    %c3 = arith.constant 3 : index
    %c0_39 = arith.constant 0 : index
    %95 = vector.load %arg7[%c3, %c0_39] : memref<5x128xf32, #tpu.memory_space<vmem>>, vector<1x128xf32>
    %96 = vector.shape_cast %95 : vector<1x128xf32> to vector<128xf32>
    %c4 = arith.constant 4 : index
    %c0_40 = arith.constant 0 : index
    %97 = vector.load %arg7[%c4, %c0_40] : memref<5x128xf32, #tpu.memory_space<vmem>>, vector<1x128xf32>
    %98 = vector.shape_cast %97 : vector<1x128xf32> to vector<128xf32>
    %cst_41 = arith.constant dense<0.000000e+00> : vector<16xf32>
    %99 = vector.multi_reduction <add>, %94, %cst_41 [1] : vector<16x128xf32> to vector<16xf32>
    %100 = vector.shape_cast %99 : vector<16xf32> to vector<16x1xf32>
    %cst_42 = arith.constant 1.280000e+02 : f32
    %101 = vector.broadcast %cst_42 : f32 to vector<16x1xf32>
    %102 = arith.divf %100, %101 : vector<16x1xf32>
    %103 = vector.broadcast %102 : vector<16x1xf32> to vector<16x128xf32>
    %104 = arith.subf %94, %103 : vector<16x128xf32>
    %105 = arith.mulf %104, %104 : vector<16x128xf32>
    %cst_43 = arith.constant dense<0.000000e+00> : vector<16xf32>
    %106 = vector.multi_reduction <add>, %105, %cst_43 [1] : vector<16x128xf32> to vector<16xf32>
    %107 = vector.shape_cast %106 : vector<16xf32> to vector<16x1xf32>
    %cst_44 = arith.constant 1.280000e+02 : f32
    %108 = vector.broadcast %cst_44 : f32 to vector<16x1xf32>
    %109 = arith.divf %107, %108 : vector<16x1xf32>
    %cst_45 = arith.constant 9.99999974E-6 : f32
    %110 = vector.broadcast %cst_45 : f32 to vector<16x1xf32>
    %111 = arith.addf %109, %110 : vector<16x1xf32>
    %112 = math.rsqrt %111 : vector<16x1xf32>
    %113 = vector.broadcast %112 : vector<16x1xf32> to vector<16x128xf32>
    %114 = arith.mulf %104, %113 : vector<16x128xf32>
    %115 = vector.shape_cast %96 : vector<128xf32> to vector<1x128xf32>
    %116 = vector.broadcast %115 : vector<1x128xf32> to vector<16x128xf32>
    %117 = arith.mulf %114, %116 : vector<16x128xf32>
    %118 = vector.shape_cast %98 : vector<128xf32> to vector<1x128xf32>
    %119 = vector.broadcast %118 : vector<1x128xf32> to vector<16x128xf32>
    %120 = arith.addf %117, %119 : vector<16x128xf32>
    %121 = vector.shape_cast %120 : vector<16x128xf32> to vector<2x8x128xf32>
    %c0_46 = arith.constant 0 : index
    %c0_47 = arith.constant 0 : index
    %c0_48 = arith.constant 0 : index
    %122 = vector.load %arg8[%c0_46, %c0_47, %c0_48] : memref<2x8x128xf32, #tpu.memory_space<vmem>>, vector<2x8x128xf32>
    tpu.vector_store %arg8[%c0_46, %c0_47, %c0_48], %121 {strides = array<i32>} : memref<2x8x128xf32, #tpu.memory_space<vmem>>, vector<2x8x128xf32>,
    return
  }
  func.func @transform_0(%arg0: i32) -> (i32, i32, i32) {
    %c0_i32 = arith.constant 0 : i32
    %c0_i32_0 = arith.constant 0 : i32
    %c0_i32_1 = arith.constant 0 : i32
    return %arg0, %c0_i32, %c0_i32_0 : i32, i32, i32
  }
  func.func @transform_1(%arg0: i32) -> (i32, i32) {
    %c0_i32 = arith.constant 0 : i32
    %c0_i32_0 = arith.constant 0 : i32
    %c0_i32_1 = arith.constant 0 : i32
    return %c0_i32, %c0_i32_0 : i32, i32
  }
  func.func @transform_2(%arg0: i32) -> (i32, i32) {
    %c0_i32 = arith.constant 0 : i32
    %c0_i32_0 = arith.constant 0 : i32
    %c0_i32_1 = arith.constant 0 : i32
    return %c0_i32, %c0_i32_0 : i32, i32
  }
  func.func @transform_3(%arg0: i32) -> (i32, i32) {
    %c0_i32 = arith.constant 0 : i32
    %c0_i32_0 = arith.constant 0 : i32
    %c0_i32_1 = arith.constant 0 : i32
    return %c0_i32, %c0_i32_0 : i32, i32
  }
  func.func @transform_4(%arg0: i32) -> (i32, i32) {
    %c0_i32 = arith.constant 0 : i32
    %c0_i32_0 = arith.constant 0 : i32
    %c0_i32_1 = arith.constant 0 : i32
    return %c0_i32, %c0_i32_0 : i32, i32
  }
  func.func @transform_5(%arg0: i32) -> (i32, i32) {
    %c0_i32 = arith.constant 0 : i32
    %c0_i32_0 = arith.constant 0 : i32
    %c0_i32_1 = arith.constant 0 : i32
    return %c0_i32, %c0_i32_0 : i32, i32
  }
  func.func @transform_6(%arg0: i32) -> (i32, i32) {
    %c0_i32 = arith.constant 0 : i32
    %c0_i32_0 = arith.constant 0 : i32
    %c0_i32_1 = arith.constant 0 : i32
    return %c0_i32, %c0_i32_0 : i32, i32
  }
  func.func @transform_7(%arg0: i32) -> (i32, i32, i32) {
    %c0_i32 = arith.constant 0 : i32
    %c0_i32_0 = arith.constant 0 : i32
    %c0_i32_1 = arith.constant 0 : i32
    return %arg0, %c0_i32, %c0_i32_0 : i32, i32, i32
  }
}

</mosaic_0001>

<llo_original>
// kernel: fnet_layer_forward.1
$region0: #{fnet_layer_forward.1}
  #allocation0 [shape = 'u32[]', space=smem, size = 0x4, offset = 0x4, fixed_abs, tag = 'smem constant byte address 0x4 - core index']
  #allocation1 [shape = 'u32[72,128]{1,0:T(1,128)}', space=vmem, size = 0x9000, scoped, tag = 'internal scratch']
  %s0 = inlined_call_operand.hbm [shape: f32[4,8,128], index: 0, kind: input, shape index: {}]
  %s1 = inlined_call_operand.hbm [shape: f32[8,16], index: 1, kind: input, shape index: {}]
  %s2 = inlined_call_operand.hbm [shape: f32[128,256], index: 2, kind: input, shape index: {}]
  %s3 = inlined_call_operand.hbm [shape: f32[128,256], index: 3, kind: input, shape index: {}]
  %s4 = inlined_call_operand.hbm [shape: f32[1,256], index: 4, kind: input, shape index: {}]
  %s5 = inlined_call_operand.hbm [shape: f32[256,128], index: 5, kind: input, shape index: {}]
  %s6 = inlined_call_operand.hbm [shape: f32[5,128], index: 6, kind: input, shape index: {}]
  %s7 = inlined_call_operand.hbm [shape: f32[4,8,128], index: 7, kind: output, shape index: {}]
  %s8 = sld [smem:[#allocation0]]
  $region89: #{fnet_layer_forward.1} parent=0
    _
  %s10 = ssub.s32 1, %s8
  %s11 = scalar_select 0, %s10, %s8
  $region1: #{fnet_layer_forward.1} parent=0
    #allocation2 [shape = 'u8[16384]{0}', space=vmem, size = 0x4000, scoped, tag = 'input window, operand 0']
    #allocation3 [shape = 's32[2]{0}', space=sflag, size = 0x8, scoped, tag = 'scoped memory for fnet_layer_forward.1']
    #allocation4 [shape = 's32[2]{0}', space=sflag, size = 0x8, scoped, tag = 'scoped memory for fnet_layer_forward.1']
    #allocation5 [shape = 'u8[4096]{0}', space=vmem, size = 0x1000, scoped, tag = 'input window, operand 1, single buffered']
    #allocation6 [shape = 's32[1]{0}', space=sflag, size = 0x4, scoped, tag = 'scoped memory for fnet_layer_forward.1']
    #allocation7 [shape = 'u8[131072]{0}', space=vmem, size = 0x20000, scoped, tag = 'input window, operand 2, single buffered']
    #allocation8 [shape = 'u8[131072]{0}', space=vmem, size = 0x20000, scoped, tag = 'input window, operand 3, single buffered']
    #allocation9 [shape = 's32[1]{0}', space=sflag, size = 0x4, scoped, tag = 'scoped memory for fnet_layer_forward.1']
    #allocation10 [shape = 'u8[1024]{0}', space=vmem, size = 0x400, scoped, tag = 'input window, operand 4, single buffered']
    #allocation11 [shape = 'u8[131072]{0}', space=vmem, size = 0x20000, scoped, tag = 'input window, operand 5, single buffered']
    #allocation12 [shape = 's32[1]{0}', space=sflag, size = 0x4, scoped, tag = 'scoped memory for fnet_layer_forward.1']
    #allocation13 [shape = 'u8[4096]{0}', space=vmem, size = 0x1000, scoped, tag = 'input window, operand 6, single buffered']
    #allocation14 [shape = 'u8[16384]{0}', space=vmem, size = 0x4000, scoped, tag = 'output window, operand 0']
    %12 = vsyncpa [#allocation3], 0
    %s13 = scalar_lea.sflag [#allocation3], 1
    %14 = vsyncpa %s13, 0
    %15 = vsyncpa [#allocation6], 0
    %16 = vsyncpa [#allocation9], 0
    %17 = vsyncpa [#allocation12], 0
    %18 = vsyncpa [#allocation4], 0
    %s19 = scalar_lea.sflag [#allocation4], 1
    %20 = vsyncpa %s19, 0
    loop: start=0, step=1, limit=4
    $region2: #{fnet_layer_forward.1} parent=1 // loop_pre_header
      _
    $region3: #{fnet_layer_forward.1} parent=1 // loop_header
      %s22 = sphi 0, %s26
      %p23 = scmp.ge.s32.totalorder %s22, 4
      %s32 = sphi 0, %s34
      %s35 = sphi 0, %s32
      %s36 = sphi 0, %s35
      %s52 = sphi 0, %s36
      %s56 = sphi 0, %s56
      %s58 = sphi 0, %s56
      %s59 = sphi 0, %s58
      %s73 = sphi 0, %s59
      %s77 = sphi 0, %s77
      %s79 = sphi 0, %s77
      %s80 = sphi 0, %s79
      %s94 = sphi 0, %s80
      %s98 = sphi 0, %s98
      %s100 = sphi 0, %s98
      %s101 = sphi 0, %s100
      %s115 = sphi 0, %s101
      %s119 = sphi 0, %s119
      %s121 = sphi 0, %s119
      %s122 = sphi 0, %s121
      %s136 = sphi 0, %s122
      %s140 = sphi 0, %s140
      %s142 = sphi 0, %s140
      %s143 = sphi 0, %s142
      %s157 = sphi 0, %s143
      %s161 = sphi 0, %s161
      %s163 = sphi 0, %s161
      %s164 = sphi 0, %s163
      %s178 = sphi 0, %s164
      %s184 = sphi 0, %s186
      %s187 = sphi 0, %s184
      %s188 = sphi 0, %s187
      %s204 = sphi 0, %s188
    $region4: #{fnet_layer_forward.1} parent=1 // loop_header_branch
      %25 = sbr.rel (%p23) target = $region8
    $region5: #{fnet_layer_forward.1} parent=1 // loop_body
      %s27 = ssub.s32 %s22, 1
      %s28 = ssub.s32 %s22, 2
      %s29 = sadd.s32 %s22, 1
      %s30 = ssub.s32 %s22, %s29
      %p31 = scmp.eq.s32.totalorder %s30, 0
      %s33 = sadd.s32 %s32, 1
      %s34 = scalar_select %p31, %s32, %s33
      %p37 = pneg %p31
      %p38 = scmp.eq.s32.totalorder %s22, 1
      %p39 = por %p37, %p38
      %p40 = scmp.ne.s32.totalorder %s32, %s35
      %p41 = scmp.eq.s32.totalorder %s22, 0
      %p42 = por %p40, %p41
      %p43 = scmp.ne.s32.totalorder %s32, %s35
      %p44 = scmp.eq.s32.totalorder %s27, 1
      %p45 = por %p43, %p44
      %p46 = scmp.ne.s32.totalorder %s35, %s36
      %p47 = scmp.eq.s32.totalorder %s27, 0
      %p48 = por %p46, %p47
      %p49 = scmp.ne.s32.totalorder %s35, %s36
      %p50 = scmp.eq.s32.totalorder %s28, 1
      %p51 = por %p49, %p50
      %p53 = scmp.ne.s32.totalorder %s36, %s52
      %p54 = scmp.eq.s32.totalorder %s28, 0
      %p55 = por %p53, %p54
      %s57 = sadd.s32 %s56, 1
      %p60 = scmp.eq.s32.totalorder %s22, 1
      %p61 = scmp.ne.s32.totalorder %s56, %s58
      %p62 = scmp.eq.s32.totalorder %s22, 0
      %p63 = por %p61, %p62
      %p64 = scmp.ne.s32.totalorder %s56, %s58
      %p65 = scmp.eq.s32.totalorder %s27, 1
      %p66 = por %p64, %p65
      %p67 = scmp.ne.s32.totalorder %s58, %s59
      %p68 = scmp.eq.s32.totalorder %s27, 0
      %p69 = por %p67, %p68
      %p70 = scmp.ne.s32.totalorder %s58, %s59
      %p71 = scmp.eq.s32.totalorder %s28, 1
      %p72 = por %p70, %p71
      %p74 = scmp.ne.s32.totalorder %s59, %s73
      %p75 = scmp.eq.s32.totalorder %s28, 0
      %p76 = por %p74, %p75
      %s78 = sadd.s32 %s77, 1
      %p81 = scmp.eq.s32.totalorder %s22, 1
      %p82 = scmp.ne.s32.totalorder %s77, %s79
      %p83 = scmp.eq.s32.totalorder %s22, 0
      %p84 = por %p82, %p83
      %p85 = scmp.ne.s32.totalorder %s77, %s79
      %p86 = scmp.eq.s32.totalorder %s27, 1
      %p87 = por %p85, %p86
      %p88 = scmp.ne.s32.totalorder %s79, %s80
      %p89 = scmp.eq.s32.totalorder %s27, 0
      %p90 = por %p88, %p89
      %p91 = scmp.ne.s32.totalorder %s79, %s80
      %p92 = scmp.eq.s32.totalorder %s28, 1
      %p93 = por %p91, %p92
      %p95 = scmp.ne.s32.totalorder %s80, %s94
      %p96 = scmp.eq.s32.totalorder %s28, 0
      %p97 = por %p95, %p96
      %s99 = sadd.s32 %s98, 1
      %p102 = scmp.eq.s32.totalorder %s22, 1
      %p103 = scmp.ne.s32.totalorder %s98, %s100
      %p104 = scmp.eq.s32.totalorder %s22, 0
      %p105 = por %p103, %p104
      %p106 = scmp.ne.s32.totalorder %s98, %s100
      %p107 = scmp.eq.s32.totalorder %s27, 1
      %p108 = por %p106, %p107
      %p109 = scmp.ne.s32.totalorder %s100, %s101
      %p110 = scmp.eq.s32.totalorder %s27, 0
      %p111 = por %p109, %p110
      %p112 = scmp.ne.s32.totalorder %s100, %s101
      %p113 = scmp.eq.s32.totalorder %s28, 1
      %p114 = por %p112, %p113
      %p116 = scmp.ne.s32.totalorder %s101, %s115
      %p117 = scmp.eq.s32.totalorder %s28, 0
      %p118 = por %p116, %p117
      %s120 = sadd.s32 %s119, 1
      %p123 = scmp.eq.s32.totalorder %s22, 1
      %p124 = scmp.ne.s32.totalorder %s119, %s121
      %p125 = scmp.eq.s32.totalorder %s22, 0
      %p126 = por %p124, %p125
      %p127 = scmp.ne.s32.totalorder %s119, %s121
      %p128 = scmp.eq.s32.totalorder %s27, 1
      %p129 = por %p127, %p128
      %p130 = scmp.ne.s32.totalorder %s121, %s122
      %p131 = scmp.eq.s32.totalorder %s27, 0
      %p132 = por %p130, %p131
      %p133 = scmp.ne.s32.totalorder %s121, %s122
      %p134 = scmp.eq.s32.totalorder %s28, 1
      %p135 = por %p133, %p134
      %p137 = scmp.ne.s32.totalorder %s122, %s136
      %p138 = scmp.eq.s32.totalorder %s28, 0
      %p139 = por %p137, %p138
      %s141 = sadd.s32 %s140, 1
      %p144 = scmp.eq.s32.totalorder %s22, 1
      %p145 = scmp.ne.s32.totalorder %s140, %s142
      %p146 = scmp.eq.s32.totalorder %s22, 0
      %p147 = por %p145, %p146
      %p148 = scmp.ne.s32.totalorder %s140, %s142
      %p149 = scmp.eq.s32.totalorder %s27, 1
      %p150 = por %p148, %p149
      %p151 = scmp.ne.s32.totalorder %s142, %s143
      %p152 = scmp.eq.s32.totalorder %s27, 0
      %p153 = por %p151, %p152
      %p154 = scmp.ne.s32.totalorder %s142, %s143
      %p155 = scmp.eq.s32.totalorder %s28, 1
      %p156 = por %p154, %p155
      %p158 = scmp.ne.s32.totalorder %s143, %s157
      %p159 = scmp.eq.s32.totalorder %s28, 0
      %p160 = por %p158, %p159
      %s162 = sadd.s32 %s161, 1
      %p165 = scmp.eq.s32.totalorder %s22, 1
      %p166 = scmp.ne.s32.totalorder %s161, %s163
      %p167 = scmp.eq.s32.totalorder %s22, 0
      %p168 = por %p166, %p167
      %p169 = scmp.ne.s32.totalorder %s161, %s163
      %p170 = scmp.eq.s32.totalorder %s27, 1
      %p171 = por %p169, %p170
      %p172 = scmp.ne.s32.totalorder %s163, %s164
      %p173 = scmp.eq.s32.totalorder %s27, 0
      %p174 = por %p172, %p173
      %p175 = scmp.ne.s32.totalorder %s163, %s164
      %p176 = scmp.eq.s32.totalorder %s28, 1
      %p177 = por %p175, %p176
      %p179 = scmp.ne.s32.totalorder %s164, %s178
      %p180 = scmp.eq.s32.totalorder %s28, 0
      %p181 = por %p179, %p180
      %s182 = ssub.s32 %s22, %s29
      %p183 = scmp.eq.s32.totalorder %s182, 0
      %s185 = sadd.s32 %s184, 1
      %s186 = scalar_select %p183, %s184, %s185
      %p189 = pneg %p183
      %p190 = scmp.eq.s32.totalorder %s22, 1
      %p191 = por %p189, %p190
      %p192 = scmp.ne.s32.totalorder %s184, %s187
      %p193 = scmp.eq.s32.totalorder %s22, 0
      %p194 = por %p192, %p193
      %p195 = scmp.ne.s32.totalorder %s184, %s187
      %p196 = scmp.eq.s32.totalorder %s27, 1
      %p197 = por %p195, %p196
      %p198 = scmp.ne.s32.totalorder %s187, %s188
      %p199 = scmp.eq.s32.totalorder %s27, 0
      %p200 = por %p198, %p199
      %p201 = scmp.ne.s32.totalorder %s187, %s188
      %p202 = scmp.eq.s32.totalorder %s28, 1
      %p203 = por %p201, %p202
      %p205 = scmp.ne.s32.totalorder %s188, %s204
      %p206 = scmp.eq.s32.totalorder %s28, 0
      %p207 = por %p205, %p206
      %p208 = scmp.le.s32.totalorder 1, %s22
      %p209 = scmp.lt.s32.totalorder %s22, 3
      %p210 = pnand %p208, %p209
      %p211 = pneg %p210
      // Predicated region
      $region9: #{fnet_layer_forward.1} parent=5 // pred_check
        _
      $region10: #{fnet_layer_forward.1} parent=5 // pred_check_branch
        %213 = sbr.rel (%p210) target = $region12
      $region11: #{fnet_layer_forward.1} parent=5 // pred_region
        %s214 = ssub.s32 %s22, 1
        // Predicated region
        $region13: #{fnet_layer_forward.1} parent=11 // pred_check
          %p215 = pneg %p69
        $region14: #{fnet_layer_forward.1} parent=11 // pred_check_branch
          %217 = sbr.rel (%p215) target = $region16
        $region15: #{fnet_layer_forward.1} parent=11 // pred_region
          %219 = vsyncadd [#allocation6], 0
          %s221 = sshll.u32 %s1, 4
          %s222 = int_to_ptr.hbm [resolvable:$true] %s221
          %s223 = sshll.u32 [#allocation5], 4
          %s224 = int_to_ptr.vmem [resolvable:$true] %s223
          %226 = dma.hbm_to_vmem [thread:$0]  %s222, 128, %s224, [#allocation6]
        $region16: #{fnet_layer_forward.1} parent=11 // pred_fallthru
          _
        // Predicated region
        $region17: #{fnet_layer_forward.1} parent=11 // pred_check
          %p227 = pneg %p90
        $region18: #{fnet_layer_forward.1} parent=11 // pred_check_branch
          %229 = sbr.rel (%p227) target = $region20
        $region19: #{fnet_layer_forward.1} parent=11 // pred_region
          %231 = vsyncadd [#allocation6], 0
          %s232 = sshll.u32 %s2, 4
          %s233 = int_to_ptr.hbm [resolvable:$true] %s232
          %s234 = sshll.u32 [#allocation7], 4
          %s235 = int_to_ptr.vmem [resolvable:$true] %s234
          %240 = dma.hbm_to_vmem [thread:$0]  %s233, 4096, %s235, [#allocation6], 256, 256, 16
        $region20: #{fnet_layer_forward.1} parent=11 // pred_fallthru
          _
        // Predicated region
        $region21: #{fnet_layer_forward.1} parent=11 // pred_check
          %p241 = pneg %p111
        $region22: #{fnet_layer_forward.1} parent=11 // pred_check_branch
          %243 = sbr.rel (%p241) target = $region24
        $region23: #{fnet_layer_forward.1} parent=11 // pred_region
          %245 = vsyncadd [#allocation9], 0
          %s246 = sshll.u32 %s3, 4
          %s247 = int_to_ptr.hbm [resolvable:$true] %s246
          %s248 = sshll.u32 [#allocation8], 4
          %s249 = int_to_ptr.vmem [resolvable:$true] %s248
          %254 = dma.hbm_to_vmem [thread:$0]  %s247, 4096, %s249, [#allocation9], 256, 256, 16
        $region24: #{fnet_layer_forward.1} parent=11 // pred_fallthru
          _
        // Predicated region
        $region25: #{fnet_layer_forward.1} parent=11 // pred_check
          %p255 = pneg %p132
        $region26: #{fnet_layer_forward.1} parent=11 // pred_check_branch
          %257 = sbr.rel (%p255) target = $region28
        $region27: #{fnet_layer_forward.1} parent=11 // pred_region
          %259 = vsyncadd [#allocation9], 0
          %s261 = sshll.u32 %s4, 4
          %s262 = int_to_ptr.hbm [resolvable:$true] %s261
          %s263 = sshll.u32 [#allocation10], 4
          %s264 = int_to_ptr.vmem [resolvable:$true] %s263
          %266 = dma.hbm_to_vmem [thread:$0]  %s262, 32, %s264, [#allocation9]
        $region28: #{fnet_layer_forward.1} parent=11 // pred_fallthru
          _
        // Predicated region
        $region29: #{fnet_layer_forward.1} parent=11 // pred_check
          %p267 = pneg %p153
        $region30: #{fnet_layer_forward.1} parent=11 // pred_check_branch
          %269 = sbr.rel (%p267) target = $region32
        $region31: #{fnet_layer_forward.1} parent=11 // pred_region
          %271 = vsyncadd [#allocation12], 0
          %s272 = sshll.u32 %s5, 4
          %s273 = int_to_ptr.hbm [resolvable:$true] %s272
          %s274 = sshll.u32 [#allocation11], 4
          %s275 = int_to_ptr.vmem [resolvable:$true] %s274
          %280 = dma.hbm_to_vmem [thread:$0]  %s273, 4096, %s275, [#allocation12], 128, 128, 8
        $region32: #{fnet_layer_forward.1} parent=11 // pred_fallthru
          _
        // Predicated region
        $region33: #{fnet_layer_forward.1} parent=11 // pred_check
          %p281 = pneg %p174
        $region34: #{fnet_layer_forward.1} parent=11 // pred_check_branch
          %283 = sbr.rel (%p281) target = $region36
        $region35: #{fnet_layer_forward.1} parent=11 // pred_region
          %285 = vsyncadd [#allocation12], 0
          %s287 = sshll.u32 %s6, 4
          %s288 = int_to_ptr.hbm [resolvable:$true] %s287
          %s289 = sshll.u32 [#allocation13], 4
          %s290 = int_to_ptr.vmem [resolvable:$true] %s289
          %292 = dma.hbm_to_vmem [thread:$0]  %s288, 128, %s290, [#allocation12]
        $region36: #{fnet_layer_forward.1} parent=11 // pred_fallthru
          _
      $region12: #{fnet_layer_forward.1} parent=5 // pred_fallthru
        _
      %p293 = scmp.lt.s32.totalorder %s22, 2
      // Predicated region
      $region37: #{fnet_layer_forward.1} parent=5 // pred_check
        %p294 = pneg %p293
      $region38: #{fnet_layer_forward.1} parent=5 // pred_check_branch
        %296 = sbr.rel (%p294) target = $region40
      $region39: #{fnet_layer_forward.1} parent=5 // pred_region
        // Predicated region
        $region41: #{fnet_layer_forward.1} parent=39 // pred_check
          %p297 = pneg %p42
        $region42: #{fnet_layer_forward.1} parent=39 // pred_check_branch
          %299 = sbr.rel (%p297) target = $region44
        $region43: #{fnet_layer_forward.1} parent=39 // pred_region
          %s300 = sand.u32 %s32, 1
          %s301 = scalar_lea.sflag [#allocation3], %s300
          %s302 = sand.u32 %s32, 1
          %s303 = smul.addr %s302, 16
          %s304 = scalar_lea.vmem [#allocation2], %s303
          %s305 = smul.u32 2, %s22
          %307 = vsyncadd %s301, 0
          %s308 = smul.addr %s305, 8
          %s309 = scalar_lea.hbm %s0, %s308
          %s310 = sshll.u32 %s309, 4
          %s311 = int_to_ptr.hbm [resolvable:$true] %s310
          %s312 = sshll.u32 %s304, 4
          %s313 = int_to_ptr.vmem [resolvable:$true] %s312
          %318 = dma.hbm_to_vmem [thread:$0]  %s311, 256, %s313, %s301, 128, 128, 8
        $region44: #{fnet_layer_forward.1} parent=39 // pred_fallthru
          _
      $region40: #{fnet_layer_forward.1} parent=5 // pred_fallthru
        _
      %p319 = scmp.le.s32.totalorder 1, %s22
      %p320 = scmp.lt.s32.totalorder %s22, 3
      %p321 = pnand %p319, %p320
      %p322 = pneg %p321
      // Predicated region
      $region45: #{fnet_layer_forward.1} parent=5 // pred_check
        _
      $region46: #{fnet_layer_forward.1} parent=5 // pred_check_branch
        %324 = sbr.rel (%p321) target = $region48
      $region47: #{fnet_layer_forward.1} parent=5 // pred_region
        %s325 = ssub.s32 %s22, 1
        %s326 = sand.u32 %s35, 1
        %s327 = scalar_lea.sflag [#allocation3], %s326
        %s328 = sand.u32 %s35, 1
        %s329 = smul.addr %s328, 16
        %s330 = scalar_lea.vmem [#allocation2], %s329
        // Predicated region
        $region49: #{fnet_layer_forward.1} parent=47 // pred_check
          %p331 = pneg %p48
        $region50: #{fnet_layer_forward.1} parent=47 // pred_check_branch
          %333 = sbr.rel (%p331) target = $region52
        $region51: #{fnet_layer_forward.1} parent=47 // pred_region
          %335 = dma.done %s327, 256
        $region52: #{fnet_layer_forward.1} parent=47 // pred_fallthru
          _
        // Predicated region
        $region53: #{fnet_layer_forward.1} parent=47 // pred_check
          %p336 = pneg %p69
        $region54: #{fnet_layer_forward.1} parent=47 // pred_check_branch
          %338 = sbr.rel (%p336) target = $region56
        $region55: #{fnet_layer_forward.1} parent=47 // pred_region
          %340 = dma.done [#allocation6], 128
        $region56: #{fnet_layer_forward.1} parent=47 // pred_fallthru
          _
        // Predicated region
        $region57: #{fnet_layer_forward.1} parent=47 // pred_check
          %p341 = pneg %p90
        $region58: #{fnet_layer_forward.1} parent=47 // pred_check_branch
          %343 = sbr.rel (%p341) target = $region60
        $region59: #{fnet_layer_forward.1} parent=47 // pred_region
          %345 = dma.done [#allocation6], 4096
        $region60: #{fnet_layer_forward.1} parent=47 // pred_fallthru
          _
        // Predicated region
        $region61: #{fnet_layer_forward.1} parent=47 // pred_check
          %p346 = pneg %p111
        $region62: #{fnet_layer_forward.1} parent=47 // pred_check_branch
          %348 = sbr.rel (%p346) target = $region64
        $region63: #{fnet_layer_forward.1} parent=47 // pred_region
          %350 = dma.done [#allocation9], 4096
        $region64: #{fnet_layer_forward.1} parent=47 // pred_fallthru
          _
        // Predicated region
        $region65: #{fnet_layer_forward.1} parent=47 // pred_check
          %p351 = pneg %p132
        $region66: #{fnet_layer_forward.1} parent=47 // pred_check_branch
          %353 = sbr.rel (%p351) target = $region68
        $region67: #{fnet_layer_forward.1} parent=47 // pred_region
          %355 = dma.done [#allocation9], 32
        $region68: #{fnet_layer_forward.1} parent=47 // pred_fallthru
          _
        // Predicated region
        $region69: #{fnet_layer_forward.1} parent=47 // pred_check
          %p356 = pneg %p153
        $region70: #{fnet_layer_forward.1} parent=47 // pred_check_branch
          %358 = sbr.rel (%p356) target = $region72
        $region71: #{fnet_layer_forward.1} parent=47 // pred_region
          %360 = dma.done [#allocation12], 4096
        $region72: #{fnet_layer_forward.1} parent=47 // pred_fallthru
          _
        // Predicated region
        $region73: #{fnet_layer_forward.1} parent=47 // pred_check
          %p361 = pneg %p174
        $region74: #{fnet_layer_forward.1} parent=47 // pred_check_branch
          %363 = sbr.rel (%p361) target = $region76
        $region75: #{fnet_layer_forward.1} parent=47 // pred_region
          %365 = dma.done [#allocation12], 128
        $region76: #{fnet_layer_forward.1} parent=47 // pred_fallthru
          _
        %s366 = sand.u32 %s35, 1
        %s367 = scalar_lea.sflag [#allocation3], %s366
        %s368 = sand.u32 %s35, 1
        %s369 = smul.addr %s368, 16
        %s370 = scalar_lea.vmem [#allocation2], %s369
        %p371 = pneg %p48
        %p372 = pneg %p45
        %p373 = pneg %p69
        %p374 = pneg %p66
        %p375 = pneg %p90
        %p376 = pneg %p87
        %p377 = pneg %p111
        %p378 = pneg %p108
        %p379 = pneg %p132
        %p380 = pneg %p129
        %p381 = pneg %p153
        %p382 = pneg %p150
        %p383 = pneg %p174
        %p384 = pneg %p171
        %p385 = pneg %p200
        %p386 = pneg %p197
        %s387 = sand.u32 %s187, 1
        %s388 = scalar_lea.sflag [#allocation4], %s387
        %s389 = sand.u32 %s187, 1
        %s390 = smul.addr %s389, 16
        %s391 = scalar_lea.vmem [#allocation14], %s390
        %s392 = smul.u32 2, %s27
        %s393 = smul.u32 2, %s27
        %v394 = vld [vmem:[%s330] sm:$0xff]
        %v395 = vld [vmem:[%s330 + $0x8] sm:$0xff]
        %v396 = vld [vmem:[#allocation7] sm:$0xff]
        %v397 = vld [vmem:[#allocation7 + $0x8] sm:$0xff]
        %v398 = vld [vmem:[#allocation7 + $0x10] sm:$0xff]
        %v399 = vld [vmem:[#allocation7 + $0x18] sm:$0xff]
        %v400 = vld [vmem:[#allocation7 + $0x20] sm:$0xff]
        %v401 = vld [vmem:[#allocation7 + $0x28] sm:$0xff]
        %v402 = vld [vmem:[#allocation7 + $0x30] sm:$0xff]
        %v403 = vld [vmem:[#allocation7 + $0x38] sm:$0xff]
        %v404 = vld [vmem:[#allocation7 + $0x40] sm:$0xff]
        %v405 = vld [vmem:[#allocation7 + $0x48] sm:$0xff]
        %v406 = vld [vmem:[#allocation7 + $0x50] sm:$0xff]
        %v407 = vld [vmem:[#allocation7 + $0x58] sm:$0xff]
        %v408 = vld [vmem:[#allocation7 + $0x60] sm:$0xff]
        %v409 = vld [vmem:[#allocation7 + $0x68] sm:$0xff]
        %v410 = vld [vmem:[#allocation7 + $0x70] sm:$0xff]
        %v411 = vld [vmem:[#allocation7 + $0x78] sm:$0xff]
        %v412 = vld [vmem:[#allocation7 + $0x80] sm:$0xff]
        %v413 = vld [vmem:[#allocation7 + $0x88] sm:$0xff]
        %v414 = vld [vmem:[#allocation7 + $0x90] sm:$0xff]
        %v415 = vld [vmem:[#allocation7 + $0x98] sm:$0xff]
        %v416 = vld [vmem:[#allocation7 + $0xa0] sm:$0xff]
        %v417 = vld [vmem:[#allocation7 + $0xa8] sm:$0xff]
        %v418 = vld [vmem:[#allocation7 + $0xb0] sm:$0xff]
        %v419 = vld [vmem:[#allocation7 + $0xb8] sm:$0xff]
        %v420 = vld [vmem:[#allocation7 + $0xc0] sm:$0xff]
        %v421 = vld [vmem:[#allocation7 + $0xc8] sm:$0xff]
        %v422 = vld [vmem:[#allocation7 + $0xd0] sm:$0xff]
        %v423 = vld [vmem:[#allocation7 + $0xd8] sm:$0xff]
        %v424 = vld [vmem:[#allocation7 + $0xe0] sm:$0xff]
        %v425 = vld [vmem:[#allocation7 + $0xe8] sm:$0xff]
        %v426 = vld [vmem:[#allocation7 + $0xf0] sm:$0xff]
        %v427 = vld [vmem:[#allocation7 + $0xf8] sm:$0xff]
        %428 = vmatpush.msra.mxu0 %v426
        %429 = vmatpush.msra.mxu0 %v424
        %430 = vmatpush.msra.mxu0 %v422
        %431 = vmatpush.msra.mxu0 %v420
        %432 = vmatpush.msra.mxu0 %v418
        %433 = vmatpush.msra.mxu0 %v416
        %434 = vmatpush.msra.mxu0 %v414
        %435 = vmatpush.msra.mxu0 %v412
        %436 = vmatpush.msra.mxu0 %v410
        %437 = vmatpush.msra.mxu0 %v408
        %438 = vmatpush.msra.mxu0 %v406
        %439 = vmatpush.msra.mxu0 %v404
        %440 = vmatpush.msra.mxu0 %v402
        %441 = vmatpush.msra.mxu0 %v400
        %442 = vmatpush.msra.mxu0 %v398
        %443 = vmatpush.msra.mxu0 %v396
        %444 = vmatmul.f32.gmra.mxu0 %v394
        %v445 = vpop.f32.mrf.mxu0
        %v446 = vadd.f32 0.0, %v445
        %447 = vmatmul.f32.gmra.mxu0 %v395
        %v448 = vpop.f32.mrf.mxu0
        %v449 = vadd.f32 0.0, %v448
        %450 = vdwg.mxu0
        %451 = vmatpush.msra.mxu0 %v427
        %452 = vmatpush.msra.mxu0 %v425
        %453 = vmatpush.msra.mxu0 %v423
        %454 = vmatpush.msra.mxu0 %v421
        %455 = vmatpush.msra.mxu0 %v419
        %456 = vmatpush.msra.mxu0 %v417
        %457 = vmatpush.msra.mxu0 %v415
        %458 = vmatpush.msra.mxu0 %v413
        %459 = vmatpush.msra.mxu0 %v411
        %460 = vmatpush.msra.mxu0 %v409
        %461 = vmatpush.msra.mxu0 %v407
        %462 = vmatpush.msra.mxu0 %v405
        %463 = vmatpush.msra.mxu0 %v403
        %464 = vmatpush.msra.mxu0 %v401
        %465 = vmatpush.msra.mxu0 %v399
        %466 = vmatpush.msra.mxu0 %v397
        %467 = vmatmul.f32.gmra.mxu0 %v394
        %v468 = vpop.f32.mrf.mxu0
        %v469 = vadd.f32 0.0, %v468
        %470 = vmatmul.f32.gmra.mxu0 %v395
        %v471 = vpop.f32.mrf.mxu0
        %v472 = vadd.f32 0.0, %v471
        %473 = vdwg.mxu0
        %v474 = vld [vmem:[#allocation5] sm:$0xff]
        %vm475 = vcmask 130048
        %v477 = vsel %vm475, %v474, 0
        %479 = vmatpush.msra.mxu0 0.0
        %480 = vmatpush.msra.mxu0 0.0
        %481 = vmatpush.msra.mxu0 0.0
        %482 = vmatpush.msra.mxu0 0.0
        %483 = vmatpush.msra.mxu0 0.0
        %484 = vmatpush.msra.mxu0 0.0
        %485 = vmatpush.msra.mxu0 0.0
        %486 = vmatpush.msra.mxu0 0.0
        %487 = vmatpush.msra.mxu0 0.0
        %488 = vmatpush.msra.mxu0 0.0
        %489 = vmatpush.msra.mxu0 0.0
        %490 = vmatpush.msra.mxu0 0.0
        %491 = vmatpush.msra.mxu0 0.0
        %492 = vmatpush.msra.mxu0 0.0
        %493 = vmatpush.msra.mxu0 %v469
        %494 = vmatpush.msra.mxu0 %v446
        %495 = vmatmul.f32.gmra.mxu0 %v477
        %v496 = vpop.f32.mrf.mxu0
        %v497 = vadd.f32 0.0, %v496
        %498 = vdwg.mxu0
        %499 = vmatpush.msra.mxu0 0.0
        %500 = vmatpush.msra.mxu0 0.0
        %501 = vmatpush.msra.mxu0 0.0
        %502 = vmatpush.msra.mxu0 0.0
        %503 = vmatpush.msra.mxu0 0.0
        %504 = vmatpush.msra.mxu0 0.0
        %505 = vmatpush.msra.mxu0 0.0
        %506 = vmatpush.msra.mxu0 0.0
        %507 = vmatpush.msra.mxu0 0.0
        %508 = vmatpush.msra.mxu0 0.0
        %509 = vmatpush.msra.mxu0 0.0
        %510 = vmatpush.msra.mxu0 0.0
        %511 = vmatpush.msra.mxu0 0.0
        %512 = vmatpush.msra.mxu0 0.0
        %513 = vmatpush.msra.mxu0 %v472
        %514 = vmatpush.msra.mxu0 %v449
        %515 = vmatmul.f32.gmra.mxu0 %v477
        %v516 = vpop.f32.mrf.mxu0
        %v517 = vadd.f32 0.0, %v516
        %518 = vdwg.mxu0
        %v519 = vadd.f32 %v394, %v497
        %v520 = vadd.f32 %v395, %v517
        %v521 = vld [vmem:[#allocation13] sm:$0x1]
        %v522 = vld [vmem:[#allocation13 + $0x1] sm:$0x1]
        %523 = vadd.xlane.f32.xlu0 %v519
        %v524 = vpop.xlane.xlu0 %523
        %525 = vadd.xlane.f32.xlu0 %v520
        %v526 = vpop.xlane.xlu0 %525
        %v527 = vrcp.pop 128.0
        %v528 = vmul.f32 128.0, %v527
        %v529 = vsub.f32 1.0, %v528
        %v530 = vmul.f32 %v527, %v529
        %v531 = vadd.f32 %v527, %v530
        %vm532 = vweird.f32 %v527
        %v533 = vsel %vm532, %v527, %v531
        %v534 = vmul.f32 %v524, %v533
        %v535 = vmul.f32 %v526, %v533
        %v536 = vsub.f32 %v519, %v534
        %v537 = vsub.f32 %v520, %v535
        %v538 = vmul.f32 %v536, %v536
        %v539 = vmul.f32 %v537, %v537
        %540 = vadd.xlane.f32.xlu0 %v538
        %v541 = vpop.xlane.xlu0 %540
        %542 = vadd.xlane.f32.xlu0 %v539
        %v543 = vpop.xlane.xlu0 %542
        %v544 = vmul.f32 %v541, %v533
        %v545 = vmul.f32 %v543, %v533
        %v546 = vadd.f32 %v544, 1e-05
        %v547 = vadd.f32 %v545, 1e-05
        %v548 = vrsqrt.pop %v546
        %v549 = vmul.f32 %v548, %v546
        %v550 = vmul.f32 %v549, %v548
        %v551 = vmul.f32 0.5, %v550
        %v552 = vsub.f32 1.5, %v551
        %v553 = vmul.f32 %v548, %v552
        %vm554 = vweird.f32 %v546
        %vm555 = vweird.f32 %v548
        %vm556 = vmor %vm554, %vm555
        %v557 = vsel %vm556, %v548, %v553
        %v558 = vrsqrt.pop %v547
        %v559 = vmul.f32 %v558, %v547
        %v560 = vmul.f32 %v559, %v558
        %v561 = vmul.f32 0.5, %v560
        %v562 = vsub.f32 1.5, %v561
        %v563 = vmul.f32 %v558, %v562
        %vm564 = vweird.f32 %v547
        %vm565 = vweird.f32 %v558
        %vm566 = vmor %vm564, %vm565
        %v567 = vsel %vm566, %v558, %v563
        %v568 = vmul.f32 %v536, %v557
        %v569 = vmul.f32 %v537, %v567
        %v570 = vperm.slane %v521, 0
        %v571 = vmul.f32 %v568, %v570
        %v572 = vmul.f32 %v569, %v570
        %v573 = vperm.slane %v522, 0
        %v574 = vadd.f32 %v571, %v573
        %v575 = vadd.f32 %v572, %v573
        %v576 = vld [vmem:[#allocation8] sm:$0xff]
        %v577 = vld [vmem:[#allocation8 + $0x8] sm:$0xff]
        %v578 = vld [vmem:[#allocation8 + $0x10] sm:$0xff]
        %v579 = vld [vmem:[#allocation8 + $0x18] sm:$0xff]
        %v580 = vld [vmem:[#allocation8 + $0x20] sm:$0xff]
        %v581 = vld [vmem:[#allocation8 + $0x28] sm:$0xff]
        %v582 = vld [vmem:[#allocation8 + $0x30] sm:$0xff]
        %v583 = vld [vmem:[#allocation8 + $0x38] sm:$0xff]
        %v584 = vld [vmem:[#allocation8 + $0x40] sm:$0xff]
        %v585 = vld [vmem:[#allocation8 + $0x48] sm:$0xff]
        %v586 = vld [vmem:[#allocation8 + $0x50] sm:$0xff]
        %v587 = vld [vmem:[#allocation8 + $0x58] sm:$0xff]
        %v588 = vld [vmem:[#allocation8 + $0x60] sm:$0xff]
        %v589 = vld [vmem:[#allocation8 + $0x68] sm:$0xff]
        %v590 = vld [vmem:[#allocation8 + $0x70] sm:$0xff]
        %v591 = vld [vmem:[#allocation8 + $0x78] sm:$0xff]
        %v592 = vld [vmem:[#allocation8 + $0x80] sm:$0xff]
        %v593 = vld [vmem:[#allocation8 + $0x88] sm:$0xff]
        %v594 = vld [vmem:[#allocation8 + $0x90] sm:$0xff]
        %v595 = vld [vmem:[#allocation8 + $0x98] sm:$0xff]
        %v596 = vld [vmem:[#allocation8 + $0xa0] sm:$0xff]
        %v597 = vld [vmem:[#allocation8 + $0xa8] sm:$0xff]
        %v598 = vld [vmem:[#allocation8 + $0xb0] sm:$0xff]
        %v599 = vld [vmem:[#allocation8 + $0xb8] sm:$0xff]
        %v600 = vld [vmem:[#allocation8 + $0xc0] sm:$0xff]
        %v601 = vld [vmem:[#allocation8 + $0xc8] sm:$0xff]
        %v602 = vld [vmem:[#allocation8 + $0xd0] sm:$0xff]
        %v603 = vld [vmem:[#allocation8 + $0xd8] sm:$0xff]
        %v604 = vld [vmem:[#allocation8 + $0xe0] sm:$0xff]
        %v605 = vld [vmem:[#allocation8 + $0xe8] sm:$0xff]
        %v606 = vld [vmem:[#allocation8 + $0xf0] sm:$0xff]
        %v607 = vld [vmem:[#allocation8 + $0xf8] sm:$0xff]
        %v608 = vld [vmem:[#allocation10] sm:$0x3]
        %v610 = vperm.slane %v608, 0
        %v611 = vperm.slane %v608, 1
        %614 = vmatpush.msra.mxu0 %v606
        %615 = vmatpush.msra.mxu0 %v604
        %616 = vmatpush.msra.mxu0 %v602
        %617 = vmatpush.msra.mxu0 %v600
        %618 = vmatpush.msra.mxu0 %v598
        %619 = vmatpush.msra.mxu0 %v596
        %620 = vmatpush.msra.mxu0 %v594
        %621 = vmatpush.msra.mxu0 %v592
        %622 = vmatpush.msra.mxu0 %v590
        %623 = vmatpush.msra.mxu0 %v588
        %624 = vmatpush.msra.mxu0 %v586
        %625 = vmatpush.msra.mxu0 %v584
        %626 = vmatpush.msra.mxu0 %v582
        %627 = vmatpush.msra.mxu0 %v580
        %628 = vmatpush.msra.mxu0 %v578
        %629 = vmatpush.msra.mxu0 %v576
        %630 = vmatmul.f32.gmra.mxu0 %v574
        %v631 = vpop.f32.mrf.mxu0
        %v632 = vadd.f32 %v610, %v631
        %633 = vmatmul.f32.gmra.mxu0 %v575
        %v634 = vpop.f32.mrf.mxu0
        %v635 = vadd.f32 %v610, %v634
        %636 = vdwg.mxu0
        %637 = vmatpush.msra.mxu0 %v607
        %638 = vmatpush.msra.mxu0 %v605
        %639 = vmatpush.msra.mxu0 %v603
        %640 = vmatpush.msra.mxu0 %v601
        %641 = vmatpush.msra.mxu0 %v599
        %642 = vmatpush.msra.mxu0 %v597
        %643 = vmatpush.msra.mxu0 %v595
        %644 = vmatpush.msra.mxu0 %v593
        %645 = vmatpush.msra.mxu0 %v591
        %646 = vmatpush.msra.mxu0 %v589
        %647 = vmatpush.msra.mxu0 %v587
        %648 = vmatpush.msra.mxu0 %v585
        %649 = vmatpush.msra.mxu0 %v583
        %650 = vmatpush.msra.mxu0 %v581
        %651 = vmatpush.msra.mxu0 %v579
        %652 = vmatpush.msra.mxu0 %v577
        %653 = vmatmul.f32.gmra.mxu0 %v574
        %v654 = vpop.f32.mrf.mxu0
        %v655 = vadd.f32 %v611, %v654
        %656 = vmatmul.f32.gmra.mxu0 %v575
        %v657 = vpop.f32.mrf.mxu0
        %v658 = vadd.f32 %v611, %v657
        %659 = vdwg.mxu0
        %v660 = vmul.f32 %v632, 0.70710677
        %v661 = vmul.f32 %v655, 0.70710677
        %v662 = vmul.f32 %v635, 0.70710677
        %v663 = vmul.f32 %v658, 0.70710677
        %v664 = vand.u32 2147483647, %v660
        %v665 = vand.u32 2147483647, %v661
        %v666 = vand.u32 2147483647, %v662
        %v667 = vand.u32 2147483647, %v663
        %v668 = vmul.f32 %v664, 0.3275911
        %v669 = vmul.f32 %v665, 0.3275911
        %v670 = vmul.f32 %v666, 0.3275911
        %v671 = vmul.f32 %v667, 0.3275911
        %v672 = vadd.f32 %v668, 1.0
        %v673 = vadd.f32 %v669, 1.0
        %v674 = vadd.f32 %v670, 1.0
        %v675 = vadd.f32 %v671, 1.0
        %v676 = vrcp.pop %v672
        %v677 = vmul.f32 %v672, %v676
        %v678 = vsub.f32 1.0, %v677
        %v679 = vmul.f32 %v676, %v678
        %v680 = vadd.f32 %v676, %v679
        %vm681 = vweird.f32 %v672
        %vm682 = vweird.f32 %v676
        %vm683 = vmor %vm681, %vm682
        %v684 = vsel %vm683, %v676, %v680
        %v685 = vand.u32 2147483647, %v672
        %vm686 = vcmp.eq.f32.partialorder %v685, 8.507059e+37
        %v687 = vand.u32 %v672, 2147483648
        %v688 = vor.u32 1.1754944e-38, %v687
        %v689 = vsel %vm686, %v688, %v684
        %v690 = vmul.f32 1.0, %v689
        %v691 = vrcp.pop %v673
        %v692 = vmul.f32 %v673, %v691
        %v693 = vsub.f32 1.0, %v692
        %v694 = vmul.f32 %v691, %v693
        %v695 = vadd.f32 %v691, %v694
        %vm696 = vweird.f32 %v673
        %vm697 = vweird.f32 %v691
        %vm698 = vmor %vm696, %vm697
        %v699 = vsel %vm698, %v691, %v695
        %v700 = vand.u32 2147483647, %v673
        %vm701 = vcmp.eq.f32.partialorder %v700, 8.507059e+37
        %v702 = vand.u32 %v673, 2147483648
        %v703 = vor.u32 1.1754944e-38, %v702
        %v704 = vsel %vm701, %v703, %v699
        %v705 = vmul.f32 1.0, %v704
        %v706 = vrcp.pop %v674
        %v707 = vmul.f32 %v674, %v706
        %v708 = vsub.f32 1.0, %v707
        %v709 = vmul.f32 %v706, %v708
        %v710 = vadd.f32 %v706, %v709
        %vm711 = vweird.f32 %v674
        %vm712 = vweird.f32 %v706
        %vm713 = vmor %vm711, %vm712
        %v714 = vsel %vm713, %v706, %v710
        %v715 = vand.u32 2147483647, %v674
        %vm716 = vcmp.eq.f32.partialorder %v715, 8.507059e+37
        %v717 = vand.u32 %v674, 2147483648
        %v718 = vor.u32 1.1754944e-38, %v717
        %v719 = vsel %vm716, %v718, %v714
        %v720 = vmul.f32 1.0, %v719
        %v721 = vrcp.pop %v675
        %v722 = vmul.f32 %v675, %v721
        %v723 = vsub.f32 1.0, %v722
        %v724 = vmul.f32 %v721, %v723
        %v725 = vadd.f32 %v721, %v724
        %vm726 = vweird.f32 %v675
        %vm727 = vweird.f32 %v721
        %vm728 = vmor %vm726, %vm727
        %v729 = vsel %vm728, %v721, %v725
        %v730 = vand.u32 2147483647, %v675
        %vm731 = vcmp.eq.f32.partialorder %v730, 8.507059e+37
        %v732 = vand.u32 %v675, 2147483648
        %v733 = vor.u32 1.1754944e-38, %v732
        %v734 = vsel %vm731, %v733, %v729
        %v735 = vmul.f32 1.0, %v734
        %v736 = vmul.f32 %v690, 1.0614054
        %v737 = vmul.f32 %v705, 1.0614054
        %v738 = vmul.f32 %v720, 1.0614054
        %v739 = vmul.f32 %v735, 1.0614054
        %v740 = vadd.f32 %v736, -1.4531521
        %v741 = vadd.f32 %v737, -1.4531521
        %v742 = vadd.f32 %v738, -1.4531521
        %v743 = vadd.f32 %v739, -1.4531521
        %v744 = vmul.f32 %v690, %v740
        %v745 = vmul.f32 %v705, %v741
        %v746 = vmul.f32 %v720, %v742
        %v747 = vmul.f32 %v735, %v743
        %v748 = vadd.f32 %v744, 1.4214138
        %v749 = vadd.f32 %v745, 1.4214138
        %v750 = vadd.f32 %v746, 1.4214138
        %v751 = vadd.f32 %v747, 1.4214138
        %v752 = vmul.f32 %v690, %v748
        %v753 = vmul.f32 %v705, %v749
        %v754 = vmul.f32 %v720, %v750
        %v755 = vmul.f32 %v735, %v751
        %v756 = vadd.f32 %v752, -0.28449672
        %v757 = vadd.f32 %v753, -0.28449672
        %v758 = vadd.f32 %v754, -0.28449672
        %v759 = vadd.f32 %v755, -0.28449672
        %v760 = vmul.f32 %v690, %v756
        %v761 = vmul.f32 %v705, %v757
        %v762 = vmul.f32 %v720, %v758
        %v763 = vmul.f32 %v735, %v759
        %v764 = vadd.f32 %v760, 0.2548296
        %v765 = vadd.f32 %v761, 0.2548296
        %v766 = vadd.f32 %v762, 0.2548296
        %v767 = vadd.f32 %v763, 0.2548296
        %v768 = vmul.f32 %v690, %v764
        %v769 = vmul.f32 %v705, %v765
        %v770 = vmul.f32 %v720, %v766
        %v771 = vmul.f32 %v735, %v767
        %v772 = vsub.f32 0.0, %v664
        %v773 = vsub.f32 0.0, %v665
        %v774 = vsub.f32 0.0, %v666
        %v775 = vsub.f32 0.0, %v667
        %v776 = vmul.f32 %v772, %v664
        %v777 = vmul.f32 %v773, %v665
        %v778 = vmul.f32 %v774, %v666
        %v779 = vmul.f32 %v775, %v667
        %v780 = vmul.f32 %v776, 1.442695
        %v781 = vpow.pop %v780
        %v782 = vmul.f32 %v777, 1.442695
        %v783 = vpow.pop %v782
        %v784 = vmul.f32 %v778, 1.442695
        %v785 = vpow.pop %v784
        %v786 = vmul.f32 %v779, 1.442695
        %v787 = vpow.pop %v786
        %v788 = vmul.f32 %v768, %v781
        %v789 = vmul.f32 %v769, %v783
        %v790 = vmul.f32 %v770, %v785
        %v791 = vmul.f32 %v771, %v787
        %v792 = vsub.f32 1.0, %v788
        %v793 = vsub.f32 1.0, %v789
        %v794 = vsub.f32 1.0, %v790
        %v795 = vsub.f32 1.0, %v791
        %vm796 = vcmp.ge.f32.partialorder %v660, 0.0
        %vm797 = vcmp.ge.f32.partialorder %v661, 0.0
        %vm798 = vcmp.ge.f32.partialorder %v662, 0.0
        %vm799 = vcmp.ge.f32.partialorder %v663, 0.0
        %v800 = vsub.f32 0.0, %v792
        %v801 = vsub.f32 0.0, %v793
        %v802 = vsub.f32 0.0, %v794
        %v803 = vsub.f32 0.0, %v795
        %v804 = vsel %vm796, %v792, %v800
        %v805 = vsel %vm797, %v793, %v801
        %v806 = vsel %vm798, %v794, %v802
        %v807 = vsel %vm799, %v795, %v803
        %v808 = vmul.f32 %v632, 0.5
        %v809 = vmul.f32 %v655, 0.5
        %v810 = vmul.f32 %v635, 0.5
        %v811 = vmul.f32 %v658, 0.5
        %v812 = vadd.f32 %v804, 1.0
        %v813 = vadd.f32 %v805, 1.0
        %v814 = vadd.f32 %v806, 1.0
        %v815 = vadd.f32 %v807, 1.0
        %v816 = vmul.f32 %v808, %v812
        %v817 = vmul.f32 %v809, %v813
        %v818 = vmul.f32 %v810, %v814
        %v819 = vmul.f32 %v811, %v815
        %v820 = vld [vmem:[#allocation11] sm:$0xff]
        %v821 = vld [vmem:[#allocation11 + $0x8] sm:$0xff]
        %v822 = vld [vmem:[#allocation11 + $0x10] sm:$0xff]
        %v823 = vld [vmem:[#allocation11 + $0x18] sm:$0xff]
        %v824 = vld [vmem:[#allocation11 + $0x20] sm:$0xff]
        %v825 = vld [vmem:[#allocation11 + $0x28] sm:$0xff]
        %v826 = vld [vmem:[#allocation11 + $0x30] sm:$0xff]
        %v827 = vld [vmem:[#allocation11 + $0x38] sm:$0xff]
        %v828 = vld [vmem:[#allocation11 + $0x40] sm:$0xff]
        %v829 = vld [vmem:[#allocation11 + $0x48] sm:$0xff]
        %v830 = vld [vmem:[#allocation11 + $0x50] sm:$0xff]
        %v831 = vld [vmem:[#allocation11 + $0x58] sm:$0xff]
        %v832 = vld [vmem:[#allocation11 + $0x60] sm:$0xff]
        %v833 = vld [vmem:[#allocation11 + $0x68] sm:$0xff]
        %v834 = vld [vmem:[#allocation11 + $0x70] sm:$0xff]
        %v835 = vld [vmem:[#allocation11 + $0x78] sm:$0xff]
        %v836 = vld [vmem:[#allocation11 + $0x80] sm:$0xff]
        %v837 = vld [vmem:[#allocation11 + $0x88] sm:$0xff]
        %v838 = vld [vmem:[#allocation11 + $0x90] sm:$0xff]
        %v839 = vld [vmem:[#allocation11 + $0x98] sm:$0xff]
        %v840 = vld [vmem:[#allocation11 + $0xa0] sm:$0xff]
        %v841 = vld [vmem:[#allocation11 + $0xa8] sm:$0xff]
        %v842 = vld [vmem:[#allocation11 + $0xb0] sm:$0xff]
        %v843 = vld [vmem:[#allocation11 + $0xb8] sm:$0xff]
        %v844 = vld [vmem:[#allocation11 + $0xc0] sm:$0xff]
        %v845 = vld [vmem:[#allocation11 + $0xc8] sm:$0xff]
        %v846 = vld [vmem:[#allocation11 + $0xd0] sm:$0xff]
        %v847 = vld [vmem:[#allocation11 + $0xd8] sm:$0xff]
        %v848 = vld [vmem:[#allocation11 + $0xe0] sm:$0xff]
        %v849 = vld [vmem:[#allocation11 + $0xe8] sm:$0xff]
        %v850 = vld [vmem:[#allocation11 + $0xf0] sm:$0xff]
        %v851 = vld [vmem:[#allocation11 + $0xf8] sm:$0xff]
        %v852 = vld [vmem:[#allocation13 + $0x2] sm:$0x1]
        %v853 = vperm.slane %v852, 0
        %854 = vmatpush.msra.mxu0 %v835
        %855 = vmatpush.msra.mxu0 %v834
        %856 = vmatpush.msra.mxu0 %v833
        %857 = vmatpush.msra.mxu0 %v832
        %858 = vmatpush.msra.mxu0 %v831
        %859 = vmatpush.msra.mxu0 %v830
        %860 = vmatpush.msra.mxu0 %v829
        %861 = vmatpush.msra.mxu0 %v828
        %862 = vmatpush.msra.mxu0 %v827
        %863 = vmatpush.msra.mxu0 %v826
        %864 = vmatpush.msra.mxu0 %v825
        %865 = vmatpush.msra.mxu0 %v824
        %866 = vmatpush.msra.mxu0 %v823
        %867 = vmatpush.msra.mxu0 %v822
        %868 = vmatpush.msra.mxu0 %v821
        %869 = vmatpush.msra.mxu0 %v820
        %870 = vmatmul.f32.gmra.mxu0 %v816
        %v871 = vpop.f32.mrf.mxu0
        %v872 = vadd.f32 %v853, %v871
        %873 = vmatmul.f32.gmra.mxu0 %v818
        %v874 = vpop.f32.mrf.mxu0
        %v875 = vadd.f32 %v853, %v874
        %876 = vdwg.mxu0
        %877 = vmatpush.msra.mxu0 %v851
        %878 = vmatpush.msra.mxu0 %v850
        %879 = vmatpush.msra.mxu0 %v849
        %880 = vmatpush.msra.mxu0 %v848
        %881 = vmatpush.msra.mxu0 %v847
        %882 = vmatpush.msra.mxu0 %v846
        %883 = vmatpush.msra.mxu0 %v845
        %884 = vmatpush.msra.mxu0 %v844
        %885 = vmatpush.msra.mxu0 %v843
        %886 = vmatpush.msra.mxu0 %v842
        %887 = vmatpush.msra.mxu0 %v841
        %888 = vmatpush.msra.mxu0 %v840
        %889 = vmatpush.msra.mxu0 %v839
        %890 = vmatpush.msra.mxu0 %v838
        %891 = vmatpush.msra.mxu0 %v837
        %892 = vmatpush.msra.mxu0 %v836
        %893 = vmatmul.f32.gmra.mxu0 %v817
        %v894 = vpop.f32.mrf.mxu0
        %v895 = vadd.f32 %v872, %v894
        %896 = vmatmul.f32.gmra.mxu0 %v819
        %v897 = vpop.f32.mrf.mxu0
        %v898 = vadd.f32 %v875, %v897
        %899 = vdwg.mxu0
        %v900 = vadd.f32 %v574, %v895
        %v901 = vadd.f32 %v575, %v898
        %v902 = vld [vmem:[#allocation13 + $0x3] sm:$0x1]
        %v903 = vld [vmem:[#allocation13 + $0x4] sm:$0x1]
        %904 = vadd.xlane.f32.xlu0 %v900
        %v905 = vpop.xlane.xlu0 %904
        %906 = vadd.xlane.f32.xlu0 %v901
        %v907 = vpop.xlane.xlu0 %906
        %v908 = vmul.f32 %v905, %v533
        %v909 = vmul.f32 %v907, %v533
        %v910 = vsub.f32 %v900, %v908
        %v911 = vsub.f32 %v901, %v909
        %v912 = vmul.f32 %v910, %v910
        %v913 = vmul.f32 %v911, %v911
        %914 = vadd.xlane.f32.xlu0 %v912
        %v915 = vpop.xlane.xlu0 %914
        %916 = vadd.xlane.f32.xlu0 %v913
        %v917 = vpop.xlane.xlu0 %916
        %v918 = vmul.f32 %v915, %v533
        %v919 = vmul.f32 %v917, %v533
        %v920 = vadd.f32 %v918, 1e-05
        %v921 = vadd.f32 %v919, 1e-05
        %v922 = vrsqrt.pop %v920
        %v923 = vmul.f32 %v922, %v920
        %v924 = vmul.f32 %v923, %v922
        %v925 = vmul.f32 0.5, %v924
        %v926 = vsub.f32 1.5, %v925
        %v927 = vmul.f32 %v922, %v926
        %vm928 = vweird.f32 %v920
        %vm929 = vweird.f32 %v922
        %vm930 = vmor %vm928, %vm929
        %v931 = vsel %vm930, %v922, %v927
        %v932 = vrsqrt.pop %v921
        %v933 = vmul.f32 %v932, %v921
        %v934 = vmul.f32 %v933, %v932
        %v935 = vmul.f32 0.5, %v934
        %v936 = vsub.f32 1.5, %v935
        %v937 = vmul.f32 %v932, %v936
        %vm938 = vweird.f32 %v921
        %vm939 = vweird.f32 %v932
        %vm940 = vmor %vm938, %vm939
        %v941 = vsel %vm940, %v932, %v937
        %v942 = vmul.f32 %v910, %v931
        %v943 = vmul.f32 %v911, %v941
        %v944 = vperm.slane %v902, 0
        %v945 = vmul.f32 %v942, %v944
        %v946 = vmul.f32 %v943, %v944
        %v947 = vperm.slane %v903, 0
        %v948 = vadd.f32 %v945, %v947
        %v949 = vadd.f32 %v946, %v947
        %950 = vst [vmem:[%s391] sm:$0xff] %v948
        %951 = vst [vmem:[%s391 + $0x8] sm:$0xff] %v949
        %s952 = sand.u32 %s187, 1
        %s953 = scalar_lea.sflag [#allocation4], %s952
        %s954 = sand.u32 %s187, 1
        %s955 = smul.addr %s954, 16
        %s956 = scalar_lea.vmem [#allocation14], %s955
        // Predicated region
        $region77: #{fnet_layer_forward.1} parent=47 // pred_check
          %p957 = pneg %p197
        $region78: #{fnet_layer_forward.1} parent=47 // pred_check_branch
          %959 = sbr.rel (%p957) target = $region80
        $region79: #{fnet_layer_forward.1} parent=47 // pred_region
          %s960 = smul.u32 2, %s27
          %962 = vsyncadd %s953, 0
          %s963 = smul.addr %s960, 8
          %s964 = scalar_lea.hbm %s7, %s963
          %s965 = sshll.u32 %s956, 4
          %s966 = int_to_ptr.vmem [resolvable:$true] %s965
          %s967 = sshll.u32 %s964, 4
          %s968 = int_to_ptr.hbm [resolvable:$true] %s967
          %973 = dma.vmem_to_hbm [thread:$0]  %s966, 256, %s968, %s953, 128, 128, 8
        $region80: #{fnet_layer_forward.1} parent=47 // pred_fallthru
          _
      $region48: #{fnet_layer_forward.1} parent=5 // pred_fallthru
        _
      %p974 = scmp.le.s32.totalorder 2, %s22
      // Predicated region
      $region81: #{fnet_layer_forward.1} parent=5 // pred_check
        %p975 = pneg %p974
      $region82: #{fnet_layer_forward.1} parent=5 // pred_check_branch
        %977 = sbr.rel (%p975) target = $region84
      $region83: #{fnet_layer_forward.1} parent=5 // pred_region
        %s978 = ssub.s32 %s22, 2
        // Predicated region
        $region85: #{fnet_layer_forward.1} parent=83 // pred_check
          %p979 = pneg %p203
        $region86: #{fnet_layer_forward.1} parent=83 // pred_check_branch
          %981 = sbr.rel (%p979) target = $region88
        $region87: #{fnet_layer_forward.1} parent=83 // pred_region
          %s982 = sand.u32 %s188, 1
          %s983 = scalar_lea.sflag [#allocation4], %s982
          %s984 = sand.u32 %s188, 1
          %s985 = smul.addr %s984, 16
          %s986 = scalar_lea.vmem [#allocation14], %s985
          %988 = dma.done %s983, 256
        $region88: #{fnet_layer_forward.1} parent=83 // pred_fallthru
          _
      $region84: #{fnet_layer_forward.1} parent=5 // pred_fallthru
        _
    $region6: #{fnet_layer_forward.1} parent=1 // loop_footer
      %s26 = sadd.s32 1, %s22
    $region7: #{fnet_layer_forward.1} parent=1 // loop_footer_branch
      %21 = sbr.rel target = $region3
    $region8: #{fnet_layer_forward.1} parent=1 // loop_exit
      _
    %989 = vsyncpa [#allocation3], 1
    %s990 = scalar_lea.sflag [#allocation3], 1
    %991 = vsyncpa %s990, 1
    %992 = vsyncpa [#allocation6], 1
    %993 = vsyncpa [#allocation9], 1
    %994 = vsyncpa [#allocation12], 1
    %995 = vsyncpa [#allocation4], 1
    %s996 = scalar_lea.sflag [#allocation4], 1
    %997 = vsyncpa %s996, 1

</llo_original>
